<compile_context>
chip_gen: v5e
topology: v5e:2x2
jax: 0.10.0
libtpu: 0.0.40
codegen_flags: <defaults>
</compile_context>

<pallas_src>
import jax
import jax.numpy as jnp
from jax.experimental import pallas as pl
from jax.experimental.pallas import tpu as pltpu


def _round_up(a, m):
    return ((a + m - 1) // m) * m


def autoencoder_kernel(x_ref, w_ref, b_ref, out_ref):
    """x_ref: (H, BT) feature-major activations; w_ref: (L, H, H); b_ref: (L, H, 1)."""
    n_layers = w_ref.shape[0]
    h = x_ref[...]                                                 # (H, BT) f32
    for l in range(n_layers):                                      # static unroll, 6 tiny layers
        h = jnp.dot(w_ref[l], h, preferred_element_type=jnp.float32) + b_ref[l]
        if l != n_layers - 1:                                      # no ReLU on final decoder layer
            h = jnp.maximum(h, 0.0)
    out_ref[...] = h.astype(out_ref.dtype)


def autoencoder_forward(x, params, *, batch_tile=512):
    """Forward pass of the autoencoder.

    x: (B, D) float32, PyTorch (batch, features) convention.
    params: list of (W, b) with W in PyTorch layout (out_features, in_features)
            and b of shape (out_features,).
    """
    B, D = x.shape
    n_layers = len(params)

    # Uniform padded feature width (sublane dim) covering every in/out dim.
    # (For this module all dims are <= 32, so H == 32.)
    all_dims = [D] + [w.shape[0] for w, _ in params] + [w.shape[1] for w, _ in params]
    H = _round_up(max(all_dims), 8)

    # Batch tile: multiple of 128 lanes, no larger than the (padded) batch.
    bt = max(128, min(_round_up(batch_tile, 128), _round_up(B, 128)))
    B_pad = _round_up(B, bt)
    grid = B_pad // bt

    # Pack all weights / biases into single zero-padded arrays (3 kernel inputs total).
    w_packed = jnp.zeros((n_layers, H, H), jnp.float32)
    b_packed = jnp.zeros((n_layers, H, 1), jnp.float32)
    for l, (w, b) in enumerate(params):
        o, i = w.shape
        w_packed = w_packed.at[l, :o, :i].set(w.astype(jnp.float32))
        b_packed = b_packed.at[l, :o, 0].set(b.astype(jnp.float32))

    # Feature-major, zero-padded input: (H, B_pad); batch sits in the 128-lane dim.
    xT = jnp.pad(x.astype(jnp.float32), ((0, B_pad - B), (0, H - D))).T

    out_T = pl.pallas_call(
        autoencoder_kernel,
        out_shape=jax.ShapeDtypeStruct((H, B_pad), jnp.float32),
        grid=(grid,),
        in_specs=[
            pl.BlockSpec((H, bt), lambda i: (0, i)),               # activations (batch-tiled)
            pl.BlockSpec((n_layers, H, H), lambda i: (0, 0, 0)),   # packed weights (grid-invariant)
            pl.BlockSpec((n_layers, H, 1), lambda i: (0, 0, 0)),   # packed biases  (grid-invariant)
        ],
        out_specs=pl.BlockSpec((H, bt), lambda i: (0, i)),
        compiler_params=pltpu.CompilerParams(
            dimension_semantics=("parallel",)),                    # megacore sharding on v7x
    )(xT, w_packed, b_packed)

    # Drop feature/batch padding and return to PyTorch's (batch, features) layout.
    return out_T[:D, :B].T


def init_linear(key, fan_in, fan_out):
    """PyTorch nn.Linear default init: U(-1/sqrt(fan_in), 1/sqrt(fan_in)); W is (out, in)."""
    kw, kb = jax.random.split(key)
    bound = 1.0 / jnp.sqrt(fan_in)
    w = jax.random.uniform(kw, (fan_out, fan_in), jnp.float32, -bound, bound)
    b = jax.random.uniform(kb, (fan_out,), jnp.float32, -bound, bound)
    return w, b


def reference_forward(x, params):
    """Pure-JAX reference matching PyTorch semantics: y = x @ W.T + b (+ ReLU)."""
    h = x
    n = len(params)
    for idx, (w, b) in enumerate(params):
        h = h @ w.T + b
        if idx != n - 1:
            h = jnp.maximum(h, 0.0)
    return h


if __name__ == "__main__":
    input_dim = 20      # stand-in for X_train.shape[1]
    encoding_dim = 17

    key = jax.random.PRNGKey(0)
    keys = jax.random.split(key, 8)

    layer_dims = [(input_dim, 32), (32, 24), (24, encoding_dim),
                  (encoding_dim, 24), (24, 32), (32, input_dim)]
    params = [init_linear(k, fi, fo) for k, (fi, fo) in zip(keys[:6], layer_dims)]

    # Small batch (single 128-lane tile, grid=1).
    x_small = jax.random.normal(keys[6], (16, input_dim), jnp.float32)
    out_small = jax.block_until_ready(autoencoder_forward(x_small, params))
    ref_small = reference_forward(x_small, params)
    assert out_small.shape == x_small.shape
    assert jnp.allclose(out_small, ref_small, atol=1e-4, rtol=1e-4), "small-batch mismatch"

    # Ragged, multi-tile batch: exercises grid > 1 (v7x megacore) and pad/slice path.
    x_big = jax.random.normal(keys[7], (1000, input_dim), jnp.float32)
    out_big = jax.block_until_ready(autoencoder_forward(x_big, params, batch_tile=512))
    ref_big = reference_forward(x_big, params)
    assert out_big.shape == x_big.shape
    assert jnp.allclose(out_big, ref_big, atol=1e-4, rtol=1e-4), "large-batch mismatch"

    print("KERNEL_OK")
</pallas_src>

<mosaic_0001>
module attributes {stable_mosaic.version = 11 : i64} {
  func.func @autoencoder_kernel(%arg0: i32, %arg1: memref<32x128xf32, #tpu.memory_space<vmem>>, %arg2: memref<6x32x32xf32, #tpu.memory_space<vmem>>, %arg3: memref<6x32x1xf32, #tpu.memory_space<vmem>>, %arg4: memref<32x128xf32, #tpu.memory_space<vmem>>) attributes {dimension_semantics = [#tpu.dimension_semantics<parallel>], iteration_bounds = array<i64: 1>, scalar_prefetch = 0 : i64, scratch_operands = 0 : i64, tpu.core_type = #tpu.core_type<tc>, window_params = [{transform_indices = @transform_0, window_bounds = array<i64: 32, 128>}, {pipeline_mode = #tpu.pipeline_mode<synchronous>, transform_indices = @transform_1, window_bounds = array<i64: 6, 32, 32>}, {pipeline_mode = #tpu.pipeline_mode<synchronous>, transform_indices = @transform_2, window_bounds = array<i64: 6, 32, 1>}, {transform_indices = @transform_3, window_bounds = array<i64: 32, 128>}]} {
    %c0 = arith.constant 0 : index
    %c0_0 = arith.constant 0 : index
    %0 = vector.load %arg1[%c0, %c0_0] : memref<32x128xf32, #tpu.memory_space<vmem>>, vector<32x128xf32>
    %c0_1 = arith.constant 0 : index
    %c0_2 = arith.constant 0 : index
    %c0_3 = arith.constant 0 : index
    %1 = vector.load %arg2[%c0_1, %c0_2, %c0_3] : memref<6x32x32xf32, #tpu.memory_space<vmem>>, vector<1x32x32xf32>
    %2 = vector.shape_cast %1 : vector<1x32x32xf32> to vector<32x32xf32>
    %cst = arith.constant dense<0.000000e+00> : vector<32x128xf32>
    %3 = tpu.matmul %2, %0, %cst {dimension_numbers = #tpu.dot_dimension_numbers<[1], [0], [0], [1], [0, 0, 1, 1], [], []>} : vector<32x32xf32>, vector<32x128xf32>, vector<32x128xf32> -> vector<32x128xf32>
    %c0_4 = arith.constant 0 : index
    %c0_5 = arith.constant 0 : index
    %c0_6 = arith.constant 0 : index
    %4 = vector.load %arg3[%c0_4, %c0_5, %c0_6] : memref<6x32x1xf32, #tpu.memory_space<vmem>>, vector<1x32x1xf32>
    %5 = vector.shape_cast %4 : vector<1x32x1xf32> to vector<32x1xf32>
    %6 = vector.broadcast %5 : vector<32x1xf32> to vector<32x128xf32>
    %7 = arith.addf %3, %6 : vector<32x128xf32>
    %cst_7 = arith.constant 0.000000e+00 : f32
    %8 = vector.broadcast %cst_7 : f32 to vector<32x128xf32>
    %9 = arith.maximumf %7, %8 : vector<32x128xf32>
    %c1 = arith.constant 1 : index
    %c0_8 = arith.constant 0 : index
    %c0_9 = arith.constant 0 : index
    %10 = vector.load %arg2[%c1, %c0_8, %c0_9] : memref<6x32x32xf32, #tpu.memory_space<vmem>>, vector<1x32x32xf32>
    %11 = vector.shape_cast %10 : vector<1x32x32xf32> to vector<32x32xf32>
    %cst_10 = arith.constant dense<0.000000e+00> : vector<32x128xf32>
    %12 = tpu.matmul %11, %9, %cst_10 {dimension_numbers = #tpu.dot_dimension_numbers<[1], [0], [0], [1], [0, 0, 1, 1], [], []>} : vector<32x32xf32>, vector<32x128xf32>, vector<32x128xf32> -> vector<32x128xf32>
    %c1_11 = arith.constant 1 : index
    %c0_12 = arith.constant 0 : index
    %c0_13 = arith.constant 0 : index
    %13 = vector.load %arg3[%c1_11, %c0_12, %c0_13] : memref<6x32x1xf32, #tpu.memory_space<vmem>>, vector<1x32x1xf32>
    %14 = vector.shape_cast %13 : vector<1x32x1xf32> to vector<32x1xf32>
    %15 = vector.broadcast %14 : vector<32x1xf32> to vector<32x128xf32>
    %16 = arith.addf %12, %15 : vector<32x128xf32>
    %cst_14 = arith.constant 0.000000e+00 : f32
    %17 = vector.broadcast %cst_14 : f32 to vector<32x128xf32>
    %18 = arith.maximumf %16, %17 : vector<32x128xf32>
    %c2 = arith.constant 2 : index
    %c0_15 = arith.constant 0 : index
    %c0_16 = arith.constant 0 : index
    %19 = vector.load %arg2[%c2, %c0_15, %c0_16] : memref<6x32x32xf32, #tpu.memory_space<vmem>>, vector<1x32x32xf32>
    %20 = vector.shape_cast %19 : vector<1x32x32xf32> to vector<32x32xf32>
    %cst_17 = arith.constant dense<0.000000e+00> : vector<32x128xf32>
    %21 = tpu.matmul %20, %18, %cst_17 {dimension_numbers = #tpu.dot_dimension_numbers<[1], [0], [0], [1], [0, 0, 1, 1], [], []>} : vector<32x32xf32>, vector<32x128xf32>, vector<32x128xf32> -> vector<32x128xf32>
    %c2_18 = arith.constant 2 : index
    %c0_19 = arith.constant 0 : index
    %c0_20 = arith.constant 0 : index
    %22 = vector.load %arg3[%c2_18, %c0_19, %c0_20] : memref<6x32x1xf32, #tpu.memory_space<vmem>>, vector<1x32x1xf32>
    %23 = vector.shape_cast %22 : vector<1x32x1xf32> to vector<32x1xf32>
    %24 = vector.broadcast %23 : vector<32x1xf32> to vector<32x128xf32>
    %25 = arith.addf %21, %24 : vector<32x128xf32>
    %cst_21 = arith.constant 0.000000e+00 : f32
    %26 = vector.broadcast %cst_21 : f32 to vector<32x128xf32>
    %27 = arith.maximumf %25, %26 : vector<32x128xf32>
    %c3 = arith.constant 3 : index
    %c0_22 = arith.constant 0 : index
    %c0_23 = arith.constant 0 : index
    %28 = vector.load %arg2[%c3, %c0_22, %c0_23] : memref<6x32x32xf32, #tpu.memory_space<vmem>>, vector<1x32x32xf32>
    %29 = vector.shape_cast %28 : vector<1x32x32xf32> to vector<32x32xf32>
    %cst_24 = arith.constant dense<0.000000e+00> : vector<32x128xf32>
    %30 = tpu.matmul %29, %27, %cst_24 {dimension_numbers = #tpu.dot_dimension_numbers<[1], [0], [0], [1], [0, 0, 1, 1], [], []>} : vector<32x32xf32>, vector<32x128xf32>, vector<32x128xf32> -> vector<32x128xf32>
    %c3_25 = arith.constant 3 : index
    %c0_26 = arith.constant 0 : index
    %c0_27 = arith.constant 0 : index
    %31 = vector.load %arg3[%c3_25, %c0_26, %c0_27] : memref<6x32x1xf32, #tpu.memory_space<vmem>>, vector<1x32x1xf32>
    %32 = vector.shape_cast %31 : vector<1x32x1xf32> to vector<32x1xf32>
    %33 = vector.broadcast %32 : vector<32x1xf32> to vector<32x128xf32>
    %34 = arith.addf %30, %33 : vector<32x128xf32>
    %cst_28 = arith.constant 0.000000e+00 : f32
    %35 = vector.broadcast %cst_28 : f32 to vector<32x128xf32>
    %36 = arith.maximumf %34, %35 : vector<32x128xf32>
    %c4 = arith.constant 4 : index
    %c0_29 = arith.constant 0 : index
    %c0_30 = arith.constant 0 : index
    %37 = vector.load %arg2[%c4, %c0_29, %c0_30] : memref<6x32x32xf32, #tpu.memory_space<vmem>>, vector<1x32x32xf32>
    %38 = vector.shape_cast %37 : vector<1x32x32xf32> to vector<32x32xf32>
    %cst_31 = arith.constant dense<0.000000e+00> : vector<32x128xf32>
    %39 = tpu.matmul %38, %36, %cst_31 {dimension_numbers = #tpu.dot_dimension_numbers<[1], [0], [0], [1], [0, 0, 1, 1], [], []>} : vector<32x32xf32>, vector<32x128xf32>, vector<32x128xf32> -> vector<32x128xf32>
    %c4_32 = arith.constant 4 : index
    %c0_33 = arith.constant 0 : index
    %c0_34 = arith.constant 0 : index
    %40 = vector.load %arg3[%c4_32, %c0_33, %c0_34] : memref<6x32x1xf32, #tpu.memory_space<vmem>>, vector<1x32x1xf32>
    %41 = vector.shape_cast %40 : vector<1x32x1xf32> to vector<32x1xf32>
    %42 = vector.broadcast %41 : vector<32x1xf32> to vector<32x128xf32>
    %43 = arith.addf %39, %42 : vector<32x128xf32>
    %cst_35 = arith.constant 0.000000e+00 : f32
    %44 = vector.broadcast %cst_35 : f32 to vector<32x128xf32>
    %45 = arith.maximumf %43, %44 : vector<32x128xf32>
    %c5 = arith.constant 5 : index
    %c0_36 = arith.constant 0 : index
    %c0_37 = arith.constant 0 : index
    %46 = vector.load %arg2[%c5, %c0_36, %c0_37] : memref<6x32x32xf32, #tpu.memory_space<vmem>>, vector<1x32x32xf32>
    %47 = vector.shape_cast %46 : vector<1x32x32xf32> to vector<32x32xf32>
    %cst_38 = arith.constant dense<0.000000e+00> : vector<32x128xf32>
    %48 = tpu.matmul %47, %45, %cst_38 {dimension_numbers = #tpu.dot_dimension_numbers<[1], [0], [0], [1], [0, 0, 1, 1], [], []>} : vector<32x32xf32>, vector<32x128xf32>, vector<32x128xf32> -> vector<32x128xf32>
    %c5_39 = arith.constant 5 : index
    %c0_40 = arith.constant 0 : index
    %c0_41 = arith.constant 0 : index
    %49 = vector.load %arg3[%c5_39, %c0_40, %c0_41] : memref<6x32x1xf32, #tpu.memory_space<vmem>>, vector<1x32x1xf32>
    %50 = vector.shape_cast %49 : vector<1x32x1xf32> to vector<32x1xf32>
    %51 = vector.broadcast %50 : vector<32x1xf32> to vector<32x128xf32>
    %52 = arith.addf %48, %51 : vector<32x128xf32>
    %c0_42 = arith.constant 0 : index
    %c0_43 = arith.constant 0 : index
    %53 = vector.load %arg4[%c0_42, %c0_43] : memref<32x128xf32, #tpu.memory_space<vmem>>, vector<32x128xf32>
    tpu.vector_store %arg4[%c0_42, %c0_43], %52 {strides = array<i32>} : memref<32x128xf32, #tpu.memory_space<vmem>>, vector<32x128xf32>,
    return
  }
  func.func @transform_0(%arg0: i32) -> (i32, i32) {
    %c0_i32 = arith.constant 0 : i32
    %c0_i32_0 = arith.constant 0 : i32
    return %c0_i32, %arg0 : i32, i32
  }
  func.func @transform_1(%arg0: i32) -> (i32, i32, i32) {
    %c0_i32 = arith.constant 0 : i32
    %c0_i32_0 = arith.constant 0 : i32
    %c0_i32_1 = arith.constant 0 : i32
    %c0_i32_2 = arith.constant 0 : i32
    return %c0_i32, %c0_i32_0, %c0_i32_1 : i32, i32, i32
  }
  func.func @transform_2(%arg0: i32) -> (i32, i32, i32) {
    %c0_i32 = arith.constant 0 : i32
    %c0_i32_0 = arith.constant 0 : i32
    %c0_i32_1 = arith.constant 0 : i32
    %c0_i32_2 = arith.constant 0 : i32
    return %c0_i32, %c0_i32_0, %c0_i32_1 : i32, i32, i32
  }
  func.func @transform_3(%arg0: i32) -> (i32, i32) {
    %c0_i32 = arith.constant 0 : i32
    %c0_i32_0 = arith.constant 0 : i32
    return %c0_i32, %arg0 : i32, i32
  }
}

</mosaic_0001>

<llo_original>
// kernel: tpu_custom_call.1
$region0: #{tpu_custom_call.1}
  #allocation0 [shape = 'u32[]', space=smem, size = 0x4, offset = 0x4, fixed_abs, tag = 'smem constant byte address 0x4 - core index']
  #allocation1 [shape = 'u32[72,128]{1,0:T(1,128)}', space=vmem, size = 0x9000, scoped, tag = 'internal scratch']
  %s0 = inlined_call_operand.hbm [shape: f32[32,128], index: 0, kind: input, shape index: {}]
  %s1 = inlined_call_operand.vmem [shape: f32[6,32,32], index: 1, kind: input, shape index: {}]
  %s2 = inlined_call_operand.vmem [shape: f32[6,32,1], index: 2, kind: input, shape index: {}]
  %s3 = inlined_call_operand.hbm [shape: f32[32,128], index: 3, kind: output, shape index: {}]
  %s4 = sld [smem:[#allocation0]]
  $region26: #{tpu_custom_call.1} parent=0
    _
  %s6 = ssub.s32 1, %s4
  %s7 = scalar_select 0, %s6, %s4
  $region1: #{tpu_custom_call.1} parent=0
    #allocation2 [shape = 'u8[16384]{0}', space=vmem, size = 0x4000, scoped, tag = 'input window, operand 0, single buffered']
    #allocation3 [shape = 's32[1]{0}', space=sflag, size = 0x4, scoped, tag = 'scoped memory for tpu_custom_call.1']
    #allocation4 [shape = 's32[1]{0}', space=sflag, size = 0x4, scoped, tag = 'scoped memory for tpu_custom_call.1']
    #allocation5 [shape = 'u8[16384]{0}', space=vmem, size = 0x4000, scoped, tag = 'output window, operand 0, single buffered']
    %8 = vsyncpa [#allocation3], 0
    %9 = vsyncpa [#allocation4], 0
    // Predicated region
    $region2: #{tpu_custom_call.1} parent=1 // pred_check
      _
    $region3: #{tpu_custom_call.1} parent=1 // pred_check_branch
      %11 = sbr.rel (0) target = $region5
    $region4: #{tpu_custom_call.1} parent=1 // pred_region
      %13 = vsyncadd [#allocation3], 0
      %s14 = sshll.u32 %s0, 4
      %s15 = int_to_ptr.hbm [resolvable:$true] %s14
      %s16 = sshll.u32 [#allocation2], 4
      %s17 = int_to_ptr.vmem [resolvable:$true] %s16
      %22 = dma.hbm_to_vmem [thread:$0]  %s15, 512, %s17, [#allocation3], 128, 128, 8
    $region5: #{tpu_custom_call.1} parent=1 // pred_fallthru
      _
    // Predicated region
    $region6: #{tpu_custom_call.1} parent=1 // pred_check
      _
    $region7: #{tpu_custom_call.1} parent=1 // pred_check_branch
      %24 = sbr.rel (0) target = $region9
    $region8: #{tpu_custom_call.1} parent=1 // pred_region
      _
    $region9: #{tpu_custom_call.1} parent=1 // pred_fallthru
      _
    // Predicated region
    $region10: #{tpu_custom_call.1} parent=1 // pred_check
      _
    $region11: #{tpu_custom_call.1} parent=1 // pred_check_branch
      %26 = sbr.rel (0) target = $region13
    $region12: #{tpu_custom_call.1} parent=1 // pred_region
      _
    $region13: #{tpu_custom_call.1} parent=1 // pred_fallthru
      _
    // Predicated region
    $region14: #{tpu_custom_call.1} parent=1 // pred_check
      _
    $region15: #{tpu_custom_call.1} parent=1 // pred_check_branch
      %28 = sbr.rel (0) target = $region17
    $region16: #{tpu_custom_call.1} parent=1 // pred_region
      %30 = dma.done [#allocation3], 512
    $region17: #{tpu_custom_call.1} parent=1 // pred_fallthru
      _
    %v31 = vld [vmem:[#allocation2] sm:$0xff]
    %v32 = vld [vmem:[#allocation2 + $0x8] sm:$0xff]
    %v33 = vld [vmem:[#allocation2 + $0x10] sm:$0xff]
    %v34 = vld [vmem:[#allocation2 + $0x18] sm:$0xff]
    %v35 = vld [vmem:[%s1] sm:$0xff]
    %v36 = vld [vmem:[%s1 + $0x8] sm:$0xff]
    %v37 = vld [vmem:[%s1 + $0x10] sm:$0xff]
    %v38 = vld [vmem:[%s1 + $0x18] sm:$0xff]
    %v39 = vld [vmem:[%s2] sm:$0xff]
    %v40 = vld [vmem:[%s2 + $0x8] sm:$0xff]
    %v41 = vld [vmem:[%s2 + $0x10] sm:$0xff]
    %v42 = vld [vmem:[%s2 + $0x18] sm:$0xff]
    %44 = vset.pattern.permute.xlu0 0
    %45 = vperm.xlu0 %44, %v39
    %v46 = vpop.permute.xlu0 %45
    %49 = vset.pattern.permute.xlu0 0
    %50 = vperm.xlu0 %49, %v40
    %v51 = vpop.permute.xlu0 %50
    %54 = vset.pattern.permute.xlu0 0
    %55 = vperm.xlu0 %54, %v41
    %v56 = vpop.permute.xlu0 %55
    %59 = vset.pattern.permute.xlu0 0
    %60 = vperm.xlu0 %59, %v42
    %v61 = vpop.permute.xlu0 %60
    %vm63 = vcmask 261120
    %v65 = vsel %vm63, %v35, 0
    %v68 = vsel %vm63, %v36, 0
    %v71 = vsel %vm63, %v37, 0
    %v74 = vsel %vm63, %v38, 0
    %76 = vmatpush.msra.mxu0 0.0
    %77 = vmatpush.msra.mxu0 0.0
    %78 = vmatpush.msra.mxu0 0.0
    %79 = vmatpush.msra.mxu0 0.0
    %80 = vmatpush.msra.mxu0 0.0
    %81 = vmatpush.msra.mxu0 0.0
    %82 = vmatpush.msra.mxu0 0.0
    %83 = vmatpush.msra.mxu0 0.0
    %84 = vmatpush.msra.mxu0 0.0
    %85 = vmatpush.msra.mxu0 0.0
    %86 = vmatpush.msra.mxu0 0.0
    %87 = vmatpush.msra.mxu0 0.0
    %88 = vmatpush.msra.mxu0 %v34
    %89 = vmatpush.msra.mxu0 %v33
    %90 = vmatpush.msra.mxu0 %v32
    %91 = vmatpush.msra.mxu0 %v31
    %92 = vmatmul.f32.gmra.mxu0 %v65
    %v93 = vpop.f32.mrf.mxu0
    %v94 = vadd.f32 %v46, %v93
    %95 = vmatmul.f32.gmra.mxu0 %v68
    %v96 = vpop.f32.mrf.mxu0
    %v97 = vadd.f32 %v51, %v96
    %98 = vmatmul.f32.gmra.mxu0 %v71
    %v99 = vpop.f32.mrf.mxu0
    %v100 = vadd.f32 %v56, %v99
    %101 = vmatmul.f32.gmra.mxu0 %v74
    %v102 = vpop.f32.mrf.mxu0
    %v103 = vadd.f32 %v61, %v102
    %104 = vdwg.mxu0
    %v105 = vmax.f32 %v94, 0.0
    %v106 = vmax.f32 %v97, 0.0
    %v107 = vmax.f32 %v100, 0.0
    %v108 = vmax.f32 %v103, 0.0
    %s109 = scalar_lea.vmem %s1, 32
    %v110 = vld [vmem:[%s109] sm:$0xff]
    %v111 = vld [vmem:[%s109 + $0x8] sm:$0xff]
    %v112 = vld [vmem:[%s109 + $0x10] sm:$0xff]
    %v113 = vld [vmem:[%s109 + $0x18] sm:$0xff]
    %s114 = scalar_lea.vmem %s2, 32
    %v115 = vld [vmem:[%s114] sm:$0xff]
    %v116 = vld [vmem:[%s114 + $0x8] sm:$0xff]
    %v117 = vld [vmem:[%s114 + $0x10] sm:$0xff]
    %v118 = vld [vmem:[%s114 + $0x18] sm:$0xff]
    %120 = vset.pattern.permute.xlu0 0
    %121 = vperm.xlu0 %120, %v115
    %v122 = vpop.permute.xlu0 %121
    %125 = vset.pattern.permute.xlu0 0
    %126 = vperm.xlu0 %125, %v116
    %v127 = vpop.permute.xlu0 %126
    %130 = vset.pattern.permute.xlu0 0
    %131 = vperm.xlu0 %130, %v117
    %v132 = vpop.permute.xlu0 %131
    %135 = vset.pattern.permute.xlu0 0
    %136 = vperm.xlu0 %135, %v118
    %v137 = vpop.permute.xlu0 %136
    %v140 = vsel %vm63, %v110, 0
    %v143 = vsel %vm63, %v111, 0
    %v146 = vsel %vm63, %v112, 0
    %v149 = vsel %vm63, %v113, 0
    %151 = vmatpush.msra.mxu0 0.0
    %152 = vmatpush.msra.mxu0 0.0
    %153 = vmatpush.msra.mxu0 0.0
    %154 = vmatpush.msra.mxu0 0.0
    %155 = vmatpush.msra.mxu0 0.0
    %156 = vmatpush.msra.mxu0 0.0
    %157 = vmatpush.msra.mxu0 0.0
    %158 = vmatpush.msra.mxu0 0.0
    %159 = vmatpush.msra.mxu0 0.0
    %160 = vmatpush.msra.mxu0 0.0
    %161 = vmatpush.msra.mxu0 0.0
    %162 = vmatpush.msra.mxu0 0.0
    %163 = vmatpush.msra.mxu0 %v108
    %164 = vmatpush.msra.mxu0 %v107
    %165 = vmatpush.msra.mxu0 %v106
    %166 = vmatpush.msra.mxu0 %v105
    %167 = vmatmul.f32.gmra.mxu0 %v140
    %v168 = vpop.f32.mrf.mxu0
    %v169 = vadd.f32 %v122, %v168
    %170 = vmatmul.f32.gmra.mxu0 %v143
    %v171 = vpop.f32.mrf.mxu0
    %v172 = vadd.f32 %v127, %v171
    %173 = vmatmul.f32.gmra.mxu0 %v146
    %v174 = vpop.f32.mrf.mxu0
    %v175 = vadd.f32 %v132, %v174
    %176 = vmatmul.f32.gmra.mxu0 %v149
    %v177 = vpop.f32.mrf.mxu0
    %v178 = vadd.f32 %v137, %v177
    %179 = vdwg.mxu0
    %v180 = vmax.f32 %v169, 0.0
    %v181 = vmax.f32 %v172, 0.0
    %v182 = vmax.f32 %v175, 0.0
    %v183 = vmax.f32 %v178, 0.0
    %s184 = scalar_lea.vmem %s1, 64
    %v185 = vld [vmem:[%s184] sm:$0xff]
    %v186 = vld [vmem:[%s184 + $0x8] sm:$0xff]
    %v187 = vld [vmem:[%s184 + $0x10] sm:$0xff]
    %v188 = vld [vmem:[%s184 + $0x18] sm:$0xff]
    %s189 = scalar_lea.vmem %s2, 64
    %v190 = vld [vmem:[%s189] sm:$0xff]
    %v191 = vld [vmem:[%s189 + $0x8] sm:$0xff]
    %v192 = vld [vmem:[%s189 + $0x10] sm:$0xff]
    %v193 = vld [vmem:[%s189 + $0x18] sm:$0xff]
    %195 = vset.pattern.permute.xlu0 0
    %196 = vperm.xlu0 %195, %v190
    %v197 = vpop.permute.xlu0 %196
    %200 = vset.pattern.permute.xlu0 0
    %201 = vperm.xlu0 %200, %v191
    %v202 = vpop.permute.xlu0 %201
    %205 = vset.pattern.permute.xlu0 0
    %206 = vperm.xlu0 %205, %v192
    %v207 = vpop.permute.xlu0 %206
    %210 = vset.pattern.permute.xlu0 0
    %211 = vperm.xlu0 %210, %v193
    %v212 = vpop.permute.xlu0 %211
    %v215 = vsel %vm63, %v185, 0
    %v218 = vsel %vm63, %v186, 0
    %v221 = vsel %vm63, %v187, 0
    %v224 = vsel %vm63, %v188, 0
    %226 = vmatpush.msra.mxu0 0.0
    %227 = vmatpush.msra.mxu0 0.0
    %228 = vmatpush.msra.mxu0 0.0
    %229 = vmatpush.msra.mxu0 0.0
    %230 = vmatpush.msra.mxu0 0.0
    %231 = vmatpush.msra.mxu0 0.0
    %232 = vmatpush.msra.mxu0 0.0
    %233 = vmatpush.msra.mxu0 0.0
    %234 = vmatpush.msra.mxu0 0.0
    %235 = vmatpush.msra.mxu0 0.0
    %236 = vmatpush.msra.mxu0 0.0
    %237 = vmatpush.msra.mxu0 0.0
    %238 = vmatpush.msra.mxu0 %v183
    %239 = vmatpush.msra.mxu0 %v182
    %240 = vmatpush.msra.mxu0 %v181
    %241 = vmatpush.msra.mxu0 %v180
    %242 = vmatmul.f32.gmra.mxu0 %v215
    %v243 = vpop.f32.mrf.mxu0
    %v244 = vadd.f32 %v197, %v243
    %245 = vmatmul.f32.gmra.mxu0 %v218
    %v246 = vpop.f32.mrf.mxu0
    %v247 = vadd.f32 %v202, %v246
    %248 = vmatmul.f32.gmra.mxu0 %v221
    %v249 = vpop.f32.mrf.mxu0
    %v250 = vadd.f32 %v207, %v249
    %251 = vmatmul.f32.gmra.mxu0 %v224
    %v252 = vpop.f32.mrf.mxu0
    %v253 = vadd.f32 %v212, %v252
    %254 = vdwg.mxu0
    %v255 = vmax.f32 %v244, 0.0
    %v256 = vmax.f32 %v247, 0.0
    %v257 = vmax.f32 %v250, 0.0
    %v258 = vmax.f32 %v253, 0.0
    %s259 = scalar_lea.vmem %s1, 96
    %v260 = vld [vmem:[%s259] sm:$0xff]
    %v261 = vld [vmem:[%s259 + $0x8] sm:$0xff]
    %v262 = vld [vmem:[%s259 + $0x10] sm:$0xff]
    %v263 = vld [vmem:[%s259 + $0x18] sm:$0xff]
    %s264 = scalar_lea.vmem %s2, 96
    %v265 = vld [vmem:[%s264] sm:$0xff]
    %v266 = vld [vmem:[%s264 + $0x8] sm:$0xff]
    %v267 = vld [vmem:[%s264 + $0x10] sm:$0xff]
    %v268 = vld [vmem:[%s264 + $0x18] sm:$0xff]
    %270 = vset.pattern.permute.xlu0 0
    %271 = vperm.xlu0 %270, %v265
    %v272 = vpop.permute.xlu0 %271
    %275 = vset.pattern.permute.xlu0 0
    %276 = vperm.xlu0 %275, %v266
    %v277 = vpop.permute.xlu0 %276
    %280 = vset.pattern.permute.xlu0 0
    %281 = vperm.xlu0 %280, %v267
    %v282 = vpop.permute.xlu0 %281
    %285 = vset.pattern.permute.xlu0 0
    %286 = vperm.xlu0 %285, %v268
    %v287 = vpop.permute.xlu0 %286
    %v290 = vsel %vm63, %v260, 0
    %v293 = vsel %vm63, %v261, 0
    %v296 = vsel %vm63, %v262, 0
    %v299 = vsel %vm63, %v263, 0
    %301 = vmatpush.msra.mxu0 0.0
    %302 = vmatpush.msra.mxu0 0.0
    %303 = vmatpush.msra.mxu0 0.0
    %304 = vmatpush.msra.mxu0 0.0
    %305 = vmatpush.msra.mxu0 0.0
    %306 = vmatpush.msra.mxu0 0.0
    %307 = vmatpush.msra.mxu0 0.0
    %308 = vmatpush.msra.mxu0 0.0
    %309 = vmatpush.msra.mxu0 0.0
    %310 = vmatpush.msra.mxu0 0.0
    %311 = vmatpush.msra.mxu0 0.0
    %312 = vmatpush.msra.mxu0 0.0
    %313 = vmatpush.msra.mxu0 %v258
    %314 = vmatpush.msra.mxu0 %v257
    %315 = vmatpush.msra.mxu0 %v256
    %316 = vmatpush.msra.mxu0 %v255
    %317 = vmatmul.f32.gmra.mxu0 %v290
    %v318 = vpop.f32.mrf.mxu0
    %v319 = vadd.f32 %v272, %v318
    %320 = vmatmul.f32.gmra.mxu0 %v293
    %v321 = vpop.f32.mrf.mxu0
    %v322 = vadd.f32 %v277, %v321
    %323 = vmatmul.f32.gmra.mxu0 %v296
    %v324 = vpop.f32.mrf.mxu0
    %v325 = vadd.f32 %v282, %v324
    %326 = vmatmul.f32.gmra.mxu0 %v299
    %v327 = vpop.f32.mrf.mxu0
    %v328 = vadd.f32 %v287, %v327
    %329 = vdwg.mxu0
    %v330 = vmax.f32 %v319, 0.0
    %v331 = vmax.f32 %v322, 0.0
    %v332 = vmax.f32 %v325, 0.0
    %v333 = vmax.f32 %v328, 0.0
    %s334 = scalar_lea.vmem %s1, 128
    %v335 = vld [vmem:[%s334] sm:$0xff]
    %v336 = vld [vmem:[%s334 + $0x8] sm:$0xff]
    %v337 = vld [vmem:[%s334 + $0x10] sm:$0xff]
    %v338 = vld [vmem:[%s334 + $0x18] sm:$0xff]
    %s339 = scalar_lea.vmem %s2, 128
    %v340 = vld [vmem:[%s339] sm:$0xff]
    %v341 = vld [vmem:[%s339 + $0x8] sm:$0xff]
    %v342 = vld [vmem:[%s339 + $0x10] sm:$0xff]
    %v343 = vld [vmem:[%s339 + $0x18] sm:$0xff]
    %345 = vset.pattern.permute.xlu0 0
    %346 = vperm.xlu0 %345, %v340
    %v347 = vpop.permute.xlu0 %346
    %350 = vset.pattern.permute.xlu0 0
    %351 = vperm.xlu0 %350, %v341
    %v352 = vpop.permute.xlu0 %351
    %355 = vset.pattern.permute.xlu0 0
    %356 = vperm.xlu0 %355, %v342
    %v357 = vpop.permute.xlu0 %356
    %360 = vset.pattern.permute.xlu0 0
    %361 = vperm.xlu0 %360, %v343
    %v362 = vpop.permute.xlu0 %361
    %v365 = vsel %vm63, %v335, 0
    %v368 = vsel %vm63, %v336, 0
    %v371 = vsel %vm63, %v337, 0
    %v374 = vsel %vm63, %v338, 0
    %376 = vmatpush.msra.mxu0 0.0
    %377 = vmatpush.msra.mxu0 0.0
    %378 = vmatpush.msra.mxu0 0.0
    %379 = vmatpush.msra.mxu0 0.0
    %380 = vmatpush.msra.mxu0 0.0
    %381 = vmatpush.msra.mxu0 0.0
    %382 = vmatpush.msra.mxu0 0.0
    %383 = vmatpush.msra.mxu0 0.0
    %384 = vmatpush.msra.mxu0 0.0
    %385 = vmatpush.msra.mxu0 0.0
    %386 = vmatpush.msra.mxu0 0.0
    %387 = vmatpush.msra.mxu0 0.0
    %388 = vmatpush.msra.mxu0 %v333
    %389 = vmatpush.msra.mxu0 %v332
    %390 = vmatpush.msra.mxu0 %v331
    %391 = vmatpush.msra.mxu0 %v330
    %392 = vmatmul.f32.gmra.mxu0 %v365
    %v393 = vpop.f32.mrf.mxu0
    %v394 = vadd.f32 %v347, %v393
    %395 = vmatmul.f32.gmra.mxu0 %v368
    %v396 = vpop.f32.mrf.mxu0
    %v397 = vadd.f32 %v352, %v396
    %398 = vmatmul.f32.gmra.mxu0 %v371
    %v399 = vpop.f32.mrf.mxu0
    %v400 = vadd.f32 %v357, %v399
    %401 = vmatmul.f32.gmra.mxu0 %v374
    %v402 = vpop.f32.mrf.mxu0
    %v403 = vadd.f32 %v362, %v402
    %404 = vdwg.mxu0
    %v405 = vmax.f32 %v394, 0.0
    %v406 = vmax.f32 %v397, 0.0
    %v407 = vmax.f32 %v400, 0.0
    %v408 = vmax.f32 %v403, 0.0
    %s409 = scalar_lea.vmem %s1, 160
    %v410 = vld [vmem:[%s409] sm:$0xff]
    %v411 = vld [vmem:[%s409 + $0x8] sm:$0xff]
    %v412 = vld [vmem:[%s409 + $0x10] sm:$0xff]
    %v413 = vld [vmem:[%s409 + $0x18] sm:$0xff]
    %s414 = scalar_lea.vmem %s2, 160
    %v415 = vld [vmem:[%s414] sm:$0xff]
    %v416 = vld [vmem:[%s414 + $0x8] sm:$0xff]
    %v417 = vld [vmem:[%s414 + $0x10] sm:$0xff]
    %v418 = vld [vmem:[%s414 + $0x18] sm:$0xff]
    %420 = vset.pattern.permute.xlu0 0
    %421 = vperm.xlu0 %420, %v415
    %v422 = vpop.permute.xlu0 %421
    %425 = vset.pattern.permute.xlu0 0
    %426 = vperm.xlu0 %425, %v416
    %v427 = vpop.permute.xlu0 %426
    %430 = vset.pattern.permute.xlu0 0
    %431 = vperm.xlu0 %430, %v417
    %v432 = vpop.permute.xlu0 %431
    %435 = vset.pattern.permute.xlu0 0
    %436 = vperm.xlu0 %435, %v418
    %v437 = vpop.permute.xlu0 %436
    %v440 = vsel %vm63, %v410, 0
    %v443 = vsel %vm63, %v411, 0
    %v446 = vsel %vm63, %v412, 0
    %v449 = vsel %vm63, %v413, 0
    %451 = vmatpush.msra.mxu0 0.0
    %452 = vmatpush.msra.mxu0 0.0
    %453 = vmatpush.msra.mxu0 0.0
    %454 = vmatpush.msra.mxu0 0.0
    %455 = vmatpush.msra.mxu0 0.0
    %456 = vmatpush.msra.mxu0 0.0
    %457 = vmatpush.msra.mxu0 0.0
    %458 = vmatpush.msra.mxu0 0.0
    %459 = vmatpush.msra.mxu0 0.0
    %460 = vmatpush.msra.mxu0 0.0
    %461 = vmatpush.msra.mxu0 0.0
    %462 = vmatpush.msra.mxu0 0.0
    %463 = vmatpush.msra.mxu0 %v408
    %464 = vmatpush.msra.mxu0 %v407
    %465 = vmatpush.msra.mxu0 %v406
    %466 = vmatpush.msra.mxu0 %v405
    %467 = vmatmul.f32.gmra.mxu0 %v440
    %v468 = vpop.f32.mrf.mxu0
    %v469 = vadd.f32 %v422, %v468
    %470 = vmatmul.f32.gmra.mxu0 %v443
    %v471 = vpop.f32.mrf.mxu0
    %v472 = vadd.f32 %v427, %v471
    %473 = vmatmul.f32.gmra.mxu0 %v446
    %v474 = vpop.f32.mrf.mxu0
    %v475 = vadd.f32 %v432, %v474
    %476 = vmatmul.f32.gmra.mxu0 %v449
    %v477 = vpop.f32.mrf.mxu0
    %v478 = vadd.f32 %v437, %v477
    %479 = vdwg.mxu0
    %480 = vst [vmem:[#allocation5] sm:$0xff] %v469
    %481 = vst [vmem:[#allocation5 + $0x8] sm:$0xff] %v472
    %482 = vst [vmem:[#allocation5 + $0x10] sm:$0xff] %v475
    %483 = vst [vmem:[#allocation5 + $0x18] sm:$0xff] %v478
    // Predicated region
    $region18: #{tpu_custom_call.1} parent=1 // pred_check
      _
    $region19: #{tpu_custom_call.1} parent=1 // pred_check_branch
      %485 = sbr.rel (0) target = $region21
    $region20: #{tpu_custom_call.1} parent=1 // pred_region
      %487 = vsyncadd [#allocation4], 0
      %s488 = sshll.u32 [#allocation5], 4
      %s489 = int_to_ptr.vmem [resolvable:$true] %s488
      %s490 = sshll.u32 %s3, 4
      %s491 = int_to_ptr.hbm [resolvable:$true] %s490
      %496 = dma.vmem_to_hbm [thread:$0]  %s489, 512, %s491, [#allocation4], 128, 128, 8
    $region21: #{tpu_custom_call.1} parent=1 // pred_fallthru
      _
    // Predicated region
    $region22: #{tpu_custom_call.1} parent=1 // pred_check
      _
    $region23: #{tpu_custom_call.1} parent=1 // pred_check_branch
      %498 = sbr.rel (0) target = $region25
    $region24: #{tpu_custom_call.1} parent=1 // pred_region
      %500 = dma.done [#allocation4], 512
    $region25: #{tpu_custom_call.1} parent=1 // pred_fallthru
      _
    %501 = vsyncpa [#allocation3], 1
    %502 = vsyncpa [#allocation4], 1

</llo_original>
